<compile_context>
chip_gen: v7x
topology: tpu7x:2x2x1
jax: 0.10.0
libtpu: 0.0.40
codegen_flags: <defaults>
</compile_context>

<pallas_src>
import functools
import math

import numpy as np

import jax
import jax.numpy as jnp
from jax.experimental import pallas as pl
from jax.experimental.pallas import tpu as pltpu

_TWO_PI = 2.0 * math.pi
_EPS = 1e-6
_TEMPERATURE = 10000.0


def _pe_broadcast_kernel(sin_y_ref, sin_x_ref, out_ref, *, dimension, tile_h, W):
    """Writes one (2*dimension, tile_h, W) block of the positional embedding.

    out[d,     h, w] = sin_y[d, h]   (vertical half, broadcast along lanes/W)
    out[D + d, h, w] = sin_x[d, w]   (horizontal half, broadcast along sublanes/h)

    sin_y / sin_x already contain the final sin/cos values (host precomputed),
    so there are no transcendentals and no arithmetic in the kernel body.
    """
    D = dimension
    out_ref[pl.ds(0, D), :, :] = jnp.broadcast_to(sin_y_ref[...], (D, tile_h, W))
    out_ref[pl.ds(D, D), :, :] = jnp.broadcast_to(sin_x_ref[...], (D, tile_h, W))


def _pick_tile_h(H, W, c_out, target_bytes=4 << 20):
    """Pick an H tile: <= ~4 MiB per output block, >= 2 grid steps if possible."""
    row_bytes = c_out * W * 4
    tile = max(1, target_bytes // row_bytes)
    # Aim for at least 2 grid steps (v7x has 2 TensorCores; also enables
    # compute/writeback overlap), rounded up to a sublane multiple of 8 so the
    # block shape stays legal and v5e/v6e only pay one extra ~0.35us step.
    half = -(-H // 2)               # ceil(H / 2)
    half = -(-half // 8) * 8        # round up to multiple of 8
    tile = min(tile, half)
    if tile >= H:
        return H
    return max(8, (tile // 8) * 8)


def _build_pe_call(H: int, W: int, dimension: int):
    """Build the pallas_call + host sin/cos tables for a given shape."""
    c_out = 2 * dimension
    tile_h = _pick_tile_h(H, W, c_out)
    grid = (pl.cdiv(H, tile_h),)

    # --- host-precomputed tables (float64 -> float32), pure shape constants ---
    d = np.arange(dimension)
    inv_freq = _TEMPERATURE ** (2.0 * (d // 2) / dimension)                 # (D,)
    y = np.arange(1, H + 1, dtype=np.float64) * (_TWO_PI / (H + _EPS))      # (H,)
    x = np.arange(1, W + 1, dtype=np.float64) * (_TWO_PI / (W + _EPS))      # (W,)
    y_arg = y[None, :] / inv_freq[:, None]                                  # (D, H)
    x_arg = x[None, :] / inv_freq[:, None]                                  # (D, W)
    even = (d % 2 == 0)[:, None]
    sin_y = np.where(even, np.sin(y_arg), np.cos(y_arg)).astype(np.float32)
    sin_x = np.where(even, np.sin(x_arg), np.cos(x_arg)).astype(np.float32)
    sin_y = sin_y.reshape(dimension, H, 1)   # broadcast-ready: h on sublanes
    sin_x = sin_x.reshape(dimension, 1, W)   # broadcast-ready: w on lanes

    kernel = functools.partial(
        _pe_broadcast_kernel, dimension=dimension, tile_h=tile_h, W=W
    )

    call = pl.pallas_call(
        kernel,
        out_shape=jax.ShapeDtypeStruct((c_out, H, W), jnp.float32),
        grid=grid,
        in_specs=[
            pl.BlockSpec((dimension, tile_h, 1), lambda i: (0, i, 0)),
            pl.BlockSpec((dimension, 1, W), lambda i: (0, 0, 0)),
        ],
        out_specs=pl.BlockSpec((c_out, tile_h, W), lambda i: (0, i, 0)),
        compiler_params=pltpu.CompilerParams(
            dimension_semantics=("parallel",),
        ),
        cost_estimate=pl.CostEstimate(
            flops=2 * c_out * H * W,          # broadcasts + stores, nominal
            transcendentals=0,                # all sin/cos precomputed on host
            bytes_accessed=4 * c_out * H * W + 4 * dimension * (H + W),
        ),
    )
    return call, sin_y, sin_x


@functools.lru_cache(maxsize=None)
def _materialized_pos_embed(H: int, W: int, dimension: int) -> jax.Array:
    """Run the kernel once per (H, W, dimension) and cache the device array."""
    call, sin_y, sin_x = _build_pe_call(H, W, dimension)
    out = call(jnp.asarray(sin_y), jnp.asarray(sin_x))      # (2*D, H, W)
    return out[None]                                         # (1, 2*D, H, W)


def act_sinusoidal_position_embedding_2d(x: jax.Array, dimension: int) -> jax.Array:
    """Pallas equivalent of ACTSinusoidalPositionEmbedding2d.forward.

    Args:
        x: (B, C, H, W) feature map (only H, W are used, matching the torch code).
        dimension: embedding dimension per axis (output has 2*dimension channels).
    Returns:
        (1, 2*dimension, H, W) float32 positional embedding (NCHW).
    """
    _, _, H, W = x.shape
    return _materialized_pos_embed(int(H), int(W), int(dimension))


def _reference(x: jax.Array, dimension: int) -> jax.Array:
    """Pure-JAX transliteration of the torch forward, for correctness check."""
    _, _, H, W = x.shape
    not_mask = jnp.ones((1, H, W), jnp.float32)
    y_range = jnp.cumsum(not_mask, axis=1)
    x_range = jnp.cumsum(not_mask, axis=2)
    y_range = y_range / (y_range[:, -1:, :] + _EPS) * _TWO_PI
    x_range = x_range / (x_range[:, :, -1:] + _EPS) * _TWO_PI
    inv_freq = _TEMPERATURE ** (
        2.0 * (jnp.arange(dimension, dtype=jnp.float32) // 2) / dimension
    )
    x_r = x_range[..., None] / inv_freq
    y_r = y_range[..., None] / inv_freq
    pe_x = jnp.stack(
        (jnp.sin(x_r[..., 0::2]), jnp.cos(x_r[..., 1::2])), axis=-1
    ).reshape(1, H, W, dimension)
    pe_y = jnp.stack(
        (jnp.sin(y_r[..., 0::2]), jnp.cos(y_r[..., 1::2])), axis=-1
    ).reshape(1, H, W, dimension)
    return jnp.concatenate((pe_y, pe_x), axis=3).transpose(0, 3, 1, 2)


if __name__ == "__main__":
    key = jax.random.PRNGKey(0)
    dimension = 32  # output has 2*dimension = 64 channels

    # Second shape exercises a partial final H block (H=12 with tile_h=8) and
    # a W that is not a multiple of 8/128, per the correctness-review request.
    for (B, C, H, W) in [(2, 4, 16, 16), (2, 4, 12, 20)]:
        key, sub = jax.random.split(key)
        x = jax.random.normal(sub, (B, C, H, W), dtype=jnp.float32)

        pos_embed = jax.block_until_ready(
            act_sinusoidal_position_embedding_2d(x, dimension)
        )
        ref = jax.block_until_ready(_reference(x, dimension))

        assert pos_embed.shape == (1, 2 * dimension, H, W), pos_embed.shape
        assert pos_embed.dtype == jnp.float32
        assert jnp.allclose(pos_embed, ref, atol=1e-5, rtol=1e-5), (
            (H, W, float(jnp.max(jnp.abs(pos_embed - ref))))
        )

    print("KERNEL_OK")
</pallas_src>

<mosaic_0001>
module attributes {stable_mosaic.version = 11 : i64} {
  func.func @_pe_broadcast_kernel(%arg0: i32, %arg1: memref<32x8x1xf32, #tpu.memory_space<vmem>>, %arg2: memref<32x1x16xf32, #tpu.memory_space<vmem>>, %arg3: memref<64x8x16xf32, #tpu.memory_space<vmem>>) attributes {dimension_semantics = [#tpu.dimension_semantics<parallel>], iteration_bounds = array<i64: 2>, scalar_prefetch = 0 : i64, scratch_operands = 0 : i64, tpu.core_type = #tpu.core_type<tc>, window_params = [{transform_indices = @transform_0, window_bounds = array<i64: 32, 8, 1>}, {pipeline_mode = #tpu.pipeline_mode<synchronous>, transform_indices = @transform_1, window_bounds = array<i64: 32, 1, 16>}, {transform_indices = @transform_2, window_bounds = array<i64: 64, 8, 16>}]} {
    %c0 = arith.constant 0 : index
    %c0_0 = arith.constant 0 : index
    %c0_1 = arith.constant 0 : index
    %0 = vector.load %arg1[%c0, %c0_0, %c0_1] : memref<32x8x1xf32, #tpu.memory_space<vmem>>, vector<32x8x1xf32>
    %1 = vector.shape_cast %0 : vector<32x8x1xf32> to vector<32x8x1xf32>
    %2 = vector.broadcast %1 : vector<32x8x1xf32> to vector<32x8x16xf32>
    %c0_2 = arith.constant 0 : index
    %c0_3 = arith.constant 0 : index
    %c0_4 = arith.constant 0 : index
    %3 = vector.load %arg3[%c0_2, %c0_3, %c0_4] : memref<64x8x16xf32, #tpu.memory_space<vmem>>, vector<32x8x16xf32>
    tpu.vector_store %arg3[%c0_2, %c0_3, %c0_4], %2 {strides = array<i32>} : memref<64x8x16xf32, #tpu.memory_space<vmem>>, vector<32x8x16xf32>,
    %c0_5 = arith.constant 0 : index
    %c0_6 = arith.constant 0 : index
    %c0_7 = arith.constant 0 : index
    %4 = vector.load %arg2[%c0_5, %c0_6, %c0_7] : memref<32x1x16xf32, #tpu.memory_space<vmem>>, vector<32x1x16xf32>
    %5 = vector.shape_cast %4 : vector<32x1x16xf32> to vector<32x1x16xf32>
    %6 = vector.broadcast %5 : vector<32x1x16xf32> to vector<32x8x16xf32>
    %c32 = arith.constant 32 : index
    %c0_8 = arith.constant 0 : index
    %c0_9 = arith.constant 0 : index
    %7 = vector.load %arg3[%c32, %c0_8, %c0_9] : memref<64x8x16xf32, #tpu.memory_space<vmem>>, vector<32x8x16xf32>
    tpu.vector_store %arg3[%c32, %c0_8, %c0_9], %6 {strides = array<i32>} : memref<64x8x16xf32, #tpu.memory_space<vmem>>, vector<32x8x16xf32>,
    return
  }
  func.func @transform_0(%arg0: i32) -> (i32, i32, i32) {
    %c0_i32 = arith.constant 0 : i32
    %c0_i32_0 = arith.constant 0 : i32
    %c0_i32_1 = arith.constant 0 : i32
    return %c0_i32, %arg0, %c0_i32_0 : i32, i32, i32
  }
  func.func @transform_1(%arg0: i32) -> (i32, i32, i32) {
    %c0_i32 = arith.constant 0 : i32
    %c0_i32_0 = arith.constant 0 : i32
    %c0_i32_1 = arith.constant 0 : i32
    %c0_i32_2 = arith.constant 0 : i32
    return %c0_i32, %c0_i32_0, %c0_i32_1 : i32, i32, i32
  }
  func.func @transform_2(%arg0: i32) -> (i32, i32, i32) {
    %c0_i32 = arith.constant 0 : i32
    %c0_i32_0 = arith.constant 0 : i32
    %c0_i32_1 = arith.constant 0 : i32
    return %c0_i32, %arg0, %c0_i32_0 : i32, i32, i32
  }
}

</mosaic_0001>

<llo_original>
// kernel: tpu_custom_call.1
$region0: #{tpu_custom_call.1}
  #allocation0 [shape = 'u32[]', space=smem, size = 0x4, offset = 0x4, fixed_abs, tag = 'smem constant byte address 0x4 - core index']
  #allocation1 [shape = 'u32[144,128]{1,0:T(1,128)}', space=vmem, size = 0x12000, scoped, tag = 'internal scratch']
  %s0 = inlined_call_operand.vmem [shape: f32[32,16,1], index: 0, kind: input, shape index: {}]
  %s1 = inlined_call_operand.vmem [shape: f32[32,1,16], index: 1, kind: input, shape index: {}]
  %s2 = inlined_call_operand.vmem [shape: f32[64,16,16], index: 2, kind: output, shape index: {}]
  %s3 = sld [smem:[#allocation0]]
  $region113: #{tpu_custom_call.1} parent=0
    _
  %s5 = ssub.s32 1, %s3
  %s6 = scalar_select 0, %s5, %s3
  $region1: #{tpu_custom_call.1} parent=0
    #allocation2 [shape = 'u8[262144]{0}', space=vmem, size = 0x40000, scoped, tag = 'input window, operand 0']
    #allocation3 [shape = 'u8[524288]{0}', space=vmem, size = 0x80000, scoped, tag = 'output window, operand 0']
    loop: start=0, step=1, limit=4
    $region2: #{tpu_custom_call.1} parent=1 // loop_pre_header
      _
    $region3: #{tpu_custom_call.1} parent=1 // loop_header
      %s8 = sphi 0, %s12
      %p9 = scmp.ge.s32.totalorder %s8, 4
      %s18 = sphi 0, %s20
      %s21 = sphi 0, %s18
      %s22 = sphi 0, %s21
      %s38 = sphi 0, %s22
      %s42 = sphi 0, %s42
      %s44 = sphi 0, %s42
      %s45 = sphi 0, %s44
      %s59 = sphi 0, %s45
      %s65 = sphi 0, %s67
      %s68 = sphi 0, %s65
      %s69 = sphi 0, %s68
      %s85 = sphi 0, %s69
    $region4: #{tpu_custom_call.1} parent=1 // loop_header_branch
      %11 = sbr.rel (%p9) target = $region8
    $region5: #{tpu_custom_call.1} parent=1 // loop_body
      %s13 = ssub.s32 %s8, 1
      %s14 = ssub.s32 %s8, 2
      %s15 = sadd.s32 %s8, 1
      %s16 = ssub.s32 %s8, %s15
      %p17 = scmp.eq.s32.totalorder %s16, 0
      %s19 = sadd.s32 %s18, 1
      %s20 = scalar_select %p17, %s18, %s19
      %p23 = pneg %p17
      %p24 = scmp.eq.s32.totalorder %s8, 1
      %p25 = por %p23, %p24
      %p26 = scmp.ne.s32.totalorder %s18, %s21
      %p27 = scmp.eq.s32.totalorder %s8, 0
      %p28 = por %p26, %p27
      %p29 = scmp.ne.s32.totalorder %s18, %s21
      %p30 = scmp.eq.s32.totalorder %s13, 1
      %p31 = por %p29, %p30
      %p32 = scmp.ne.s32.totalorder %s21, %s22
      %p33 = scmp.eq.s32.totalorder %s13, 0
      %p34 = por %p32, %p33
      %p35 = scmp.ne.s32.totalorder %s21, %s22
      %p36 = scmp.eq.s32.totalorder %s14, 1
      %p37 = por %p35, %p36
      %p39 = scmp.ne.s32.totalorder %s22, %s38
      %p40 = scmp.eq.s32.totalorder %s14, 0
      %p41 = por %p39, %p40
      %s43 = sadd.s32 %s42, 1
      %p46 = scmp.eq.s32.totalorder %s8, 1
      %p47 = scmp.ne.s32.totalorder %s42, %s44
      %p48 = scmp.eq.s32.totalorder %s8, 0
      %p49 = por %p47, %p48
      %p50 = scmp.ne.s32.totalorder %s42, %s44
      %p51 = scmp.eq.s32.totalorder %s13, 1
      %p52 = por %p50, %p51
      %p53 = scmp.ne.s32.totalorder %s44, %s45
      %p54 = scmp.eq.s32.totalorder %s13, 0
      %p55 = por %p53, %p54
      %p56 = scmp.ne.s32.totalorder %s44, %s45
      %p57 = scmp.eq.s32.totalorder %s14, 1
      %p58 = por %p56, %p57
      %p60 = scmp.ne.s32.totalorder %s45, %s59
      %p61 = scmp.eq.s32.totalorder %s14, 0
      %p62 = por %p60, %p61
      %s63 = ssub.s32 %s8, %s15
      %p64 = scmp.eq.s32.totalorder %s63, 0
      %s66 = sadd.s32 %s65, 1
      %s67 = scalar_select %p64, %s65, %s66
      %p70 = pneg %p64
      %p71 = scmp.eq.s32.totalorder %s8, 1
      %p72 = por %p70, %p71
      %p73 = scmp.ne.s32.totalorder %s65, %s68
      %p74 = scmp.eq.s32.totalorder %s8, 0
      %p75 = por %p73, %p74
      %p76 = scmp.ne.s32.totalorder %s65, %s68
      %p77 = scmp.eq.s32.totalorder %s13, 1
      %p78 = por %p76, %p77
      %p79 = scmp.ne.s32.totalorder %s68, %s69
      %p80 = scmp.eq.s32.totalorder %s13, 0
      %p81 = por %p79, %p80
      %p82 = scmp.ne.s32.totalorder %s68, %s69
      %p83 = scmp.eq.s32.totalorder %s14, 1
      %p84 = por %p82, %p83
      %p86 = scmp.ne.s32.totalorder %s69, %s85
      %p87 = scmp.eq.s32.totalorder %s14, 0
      %p88 = por %p86, %p87
      %p89 = scmp.le.s32.totalorder 1, %s8
      %p90 = scmp.lt.s32.totalorder %s8, 3
      %p91 = pnand %p89, %p90
      %p92 = pneg %p91
      // Predicated region
      $region9: #{tpu_custom_call.1} parent=5 // pred_check
        _
      $region10: #{tpu_custom_call.1} parent=5 // pred_check_branch
        %94 = sbr.rel (%p91) target = $region12
      $region11: #{tpu_custom_call.1} parent=5 // pred_region
        %s95 = ssub.s32 %s8, 1
        // Predicated region
        $region13: #{tpu_custom_call.1} parent=11 // pred_check
          %p96 = pneg %p55
        $region14: #{tpu_custom_call.1} parent=11 // pred_check_branch
          %98 = sbr.rel (%p96) target = $region16
        $region15: #{tpu_custom_call.1} parent=11 // pred_region
          _
        $region16: #{tpu_custom_call.1} parent=11 // pred_fallthru
          _
      $region12: #{tpu_custom_call.1} parent=5 // pred_fallthru
        _
      %p99 = scmp.lt.s32.totalorder %s8, 2
      // Predicated region
      $region17: #{tpu_custom_call.1} parent=5 // pred_check
        %p100 = pneg %p99
      $region18: #{tpu_custom_call.1} parent=5 // pred_check_branch
        %102 = sbr.rel (%p100) target = $region20
      $region19: #{tpu_custom_call.1} parent=5 // pred_region
        // Predicated region
        $region21: #{tpu_custom_call.1} parent=19 // pred_check
          %p103 = pneg %p28
        $region22: #{tpu_custom_call.1} parent=19 // pred_check_branch
          %105 = sbr.rel (%p103) target = $region24
        $region23: #{tpu_custom_call.1} parent=19 // pred_region
          %s106 = sand.u32 %s18, 1
          %s107 = sand.u32 %s18, 1
          %s108 = smul.addr %s107, 256
          %s109 = scalar_lea.vmem [#allocation2], %s108
          %s110 = smul.addr %s8, 8
          %s111 = scalar_lea.vmem %s0, %s110
          // Predicated region
          $region25: #{tpu_custom_call.1} parent=23 // pred_check
            _
          $region26: #{tpu_custom_call.1} parent=23 // pred_check_branch
            %113 = sbr.rel (0) target = $region28
          $region27: #{tpu_custom_call.1} parent=23 // pred_region
            // Predicated region
            $region29: #{tpu_custom_call.1} parent=27 // pred_check
              _
            $region30: #{tpu_custom_call.1} parent=27 // pred_check_branch
              %115 = sbr.rel (0) target = $region32
            $region31: #{tpu_custom_call.1} parent=27 // pred_region
              // Predicated region
              $region44: #{tpu_custom_call.1} parent=31 // pred_check
                _
              $region45: #{tpu_custom_call.1} parent=31 // pred_check_branch
                %192 = sbr.rel (0) target = $region47
              $region46: #{tpu_custom_call.1} parent=31 // pred_region
                loop: start=0, step=1, limit=1
                $region48: #{tpu_custom_call.1} parent=46 // loop_pre_header
                  _
                $region49: #{tpu_custom_call.1} parent=46 // loop_header
                  %s194 = sphi 0, %s198
                  %p195 = scmp.ge.s32.totalorder %s194, 1
                  %s199 = sphi %s111, %s111
                  %s200 = sphi %s109, %s109
                $region50: #{tpu_custom_call.1} parent=46 // loop_header_branch
                  %197 = sbr.rel (%p195) target = $region54
                $region51: #{tpu_custom_call.1} parent=46 // loop_body
                  %v201 = vld [vmem:[%s199] sm:$0xff]
                  %202 = vst [vmem:[%s200] sm:$0xff] %v201
                  %v203 = vld [vmem:[%s199 + $0x10] sm:$0xff]
                  %204 = vst [vmem:[%s200 + $0x8] sm:$0xff] %v203
                  %v205 = vld [vmem:[%s199 + $0x20] sm:$0xff]
                  %206 = vst [vmem:[%s200 + $0x10] sm:$0xff] %v205
                  %v207 = vld [vmem:[%s199 + $0x30] sm:$0xff]
                  %208 = vst [vmem:[%s200 + $0x18] sm:$0xff] %v207
                  %v209 = vld [vmem:[%s199 + $0x40] sm:$0xff]
                  %210 = vst [vmem:[%s200 + $0x20] sm:$0xff] %v209
                  %v211 = vld [vmem:[%s199 + $0x50] sm:$0xff]
                  %212 = vst [vmem:[%s200 + $0x28] sm:$0xff] %v211
                  %v213 = vld [vmem:[%s199 + $0x60] sm:$0xff]
                  %214 = vst [vmem:[%s200 + $0x30] sm:$0xff] %v213
                  %v215 = vld [vmem:[%s199 + $0x70] sm:$0xff]
                  %216 = vst [vmem:[%s200 + $0x38] sm:$0xff] %v215
                  %v217 = vld [vmem:[%s199 + $0x80] sm:$0xff]
                  %218 = vst [vmem:[%s200 + $0x40] sm:$0xff] %v217
                  %v219 = vld [vmem:[%s199 + $0x90] sm:$0xff]
                  %220 = vst [vmem:[%s200 + $0x48] sm:$0xff] %v219
                  %v221 = vld [vmem:[%s199 + $0xa0] sm:$0xff]
                  %222 = vst [vmem:[%s200 + $0x50] sm:$0xff] %v221
                  %v223 = vld [vmem:[%s199 + $0xb0] sm:$0xff]
                  %224 = vst [vmem:[%s200 + $0x58] sm:$0xff] %v223
                  %v225 = vld [vmem:[%s199 + $0xc0] sm:$0xff]
                  %226 = vst [vmem:[%s200 + $0x60] sm:$0xff] %v225
                  %v227 = vld [vmem:[%s199 + $0xd0] sm:$0xff]
                  %228 = vst [vmem:[%s200 + $0x68] sm:$0xff] %v227
                  %v229 = vld [vmem:[%s199 + $0xe0] sm:$0xff]
                  %230 = vst [vmem:[%s200 + $0x70] sm:$0xff] %v229
                  %v231 = vld [vmem:[%s199 + $0xf0] sm:$0xff]
                  %232 = vst [vmem:[%s200 + $0x78] sm:$0xff] %v231
                  %v233 = vld [vmem:[%s199 + $0x100] sm:$0xff]
                  %234 = vst [vmem:[%s200 + $0x80] sm:$0xff] %v233
                  %v235 = vld [vmem:[%s199 + $0x110] sm:$0xff]
                  %236 = vst [vmem:[%s200 + $0x88] sm:$0xff] %v235
                  %v237 = vld [vmem:[%s199 + $0x120] sm:$0xff]
                  %238 = vst [vmem:[%s200 + $0x90] sm:$0xff] %v237
                  %v239 = vld [vmem:[%s199 + $0x130] sm:$0xff]
                  %240 = vst [vmem:[%s200 + $0x98] sm:$0xff] %v239
                  %v241 = vld [vmem:[%s199 + $0x140] sm:$0xff]
                  %242 = vst [vmem:[%s200 + $0xa0] sm:$0xff] %v241
                  %v243 = vld [vmem:[%s199 + $0x150] sm:$0xff]
                  %244 = vst [vmem:[%s200 + $0xa8] sm:$0xff] %v243
                  %v245 = vld [vmem:[%s199 + $0x160] sm:$0xff]
                  %246 = vst [vmem:[%s200 + $0xb0] sm:$0xff] %v245
                  %v247 = vld [vmem:[%s199 + $0x170] sm:$0xff]
                  %248 = vst [vmem:[%s200 + $0xb8] sm:$0xff] %v247
                  %v249 = vld [vmem:[%s199 + $0x180] sm:$0xff]
                  %250 = vst [vmem:[%s200 + $0xc0] sm:$0xff] %v249
                  %v251 = vld [vmem:[%s199 + $0x190] sm:$0xff]
                  %252 = vst [vmem:[%s200 + $0xc8] sm:$0xff] %v251
                  %v253 = vld [vmem:[%s199 + $0x1a0] sm:$0xff]
                  %254 = vst [vmem:[%s200 + $0xd0] sm:$0xff] %v253
                  %v255 = vld [vmem:[%s199 + $0x1b0] sm:$0xff]
                  %256 = vst [vmem:[%s200 + $0xd8] sm:$0xff] %v255
                  %v257 = vld [vmem:[%s199 + $0x1c0] sm:$0xff]
                  %258 = vst [vmem:[%s200 + $0xe0] sm:$0xff] %v257
                  %v259 = vld [vmem:[%s199 + $0x1d0] sm:$0xff]
                  %260 = vst [vmem:[%s200 + $0xe8] sm:$0xff] %v259
                  %v261 = vld [vmem:[%s199 + $0x1e0] sm:$0xff]
                  %262 = vst [vmem:[%s200 + $0xf0] sm:$0xff] %v261
                  %v263 = vld [vmem:[%s199 + $0x1f0] sm:$0xff]
                  %264 = vst [vmem:[%s200 + $0xf8] sm:$0xff] %v263
                $region52: #{tpu_custom_call.1} parent=46 // loop_footer
                  %s198 = sadd.s32 1, %s194
                $region53: #{tpu_custom_call.1} parent=46 // loop_footer_branch
                  %193 = sbr.rel target = $region49
                $region54: #{tpu_custom_call.1} parent=46 // loop_exit
                  _
              $region47: #{tpu_custom_call.1} parent=31 // pred_fallthru
                _
              // Predicated region
              $region55: #{tpu_custom_call.1} parent=31 // pred_check
                _
              $region56: #{tpu_custom_call.1} parent=31 // pred_check_branch
                %266 = sbr.rel target = $region58
              $region57: #{tpu_custom_call.1} parent=31 // pred_region
                _
              $region58: #{tpu_custom_call.1} parent=31 // pred_fallthru
                _
            $region32: #{tpu_custom_call.1} parent=27 // pred_fallthru
              _
            // Predicated region
            $region33: #{tpu_custom_call.1} parent=27 // pred_check
              _
            $region34: #{tpu_custom_call.1} parent=27 // pred_check_branch
              %117 = sbr.rel target = $region36
            $region35: #{tpu_custom_call.1} parent=27 // pred_region
              loop: start=0, step=1, limit=1
              $region37: #{tpu_custom_call.1} parent=35 // loop_pre_header
                _
              $region38: #{tpu_custom_call.1} parent=35 // loop_header
                %s120 = sphi 0, %s124
                %p121 = scmp.ge.s32.totalorder %s120, 1
                %s125 = sphi %s111, %s111
                %s126 = sphi %s109, %s109
              $region39: #{tpu_custom_call.1} parent=35 // loop_header_branch
                %123 = sbr.rel (%p121) target = $region43
              $region40: #{tpu_custom_call.1} parent=35 // loop_body
                %v127 = vld [vmem:[%s125] sm:$0xff]
                %128 = vst [vmem:[%s126] sm:$0xff] %v127
                %v129 = vld [vmem:[%s125 + $0x10] sm:$0xff]
                %130 = vst [vmem:[%s126 + $0x8] sm:$0xff] %v129
                %v131 = vld [vmem:[%s125 + $0x20] sm:$0xff]
                %132 = vst [vmem:[%s126 + $0x10] sm:$0xff] %v131
                %v133 = vld [vmem:[%s125 + $0x30] sm:$0xff]
                %134 = vst [vmem:[%s126 + $0x18] sm:$0xff] %v133
                %v135 = vld [vmem:[%s125 + $0x40] sm:$0xff]
                %136 = vst [vmem:[%s126 + $0x20] sm:$0xff] %v135
                %v137 = vld [vmem:[%s125 + $0x50] sm:$0xff]
                %138 = vst [vmem:[%s126 + $0x28] sm:$0xff] %v137
                %v139 = vld [vmem:[%s125 + $0x60] sm:$0xff]
                %140 = vst [vmem:[%s126 + $0x30] sm:$0xff] %v139
                %v141 = vld [vmem:[%s125 + $0x70] sm:$0xff]
                %142 = vst [vmem:[%s126 + $0x38] sm:$0xff] %v141
                %v143 = vld [vmem:[%s125 + $0x80] sm:$0xff]
                %144 = vst [vmem:[%s126 + $0x40] sm:$0xff] %v143
                %v145 = vld [vmem:[%s125 + $0x90] sm:$0xff]
                %146 = vst [vmem:[%s126 + $0x48] sm:$0xff] %v145
                %v147 = vld [vmem:[%s125 + $0xa0] sm:$0xff]
                %148 = vst [vmem:[%s126 + $0x50] sm:$0xff] %v147
                %v149 = vld [vmem:[%s125 + $0xb0] sm:$0xff]
                %150 = vst [vmem:[%s126 + $0x58] sm:$0xff] %v149
                %v151 = vld [vmem:[%s125 + $0xc0] sm:$0xff]
                %152 = vst [vmem:[%s126 + $0x60] sm:$0xff] %v151
                %v153 = vld [vmem:[%s125 + $0xd0] sm:$0xff]
                %154 = vst [vmem:[%s126 + $0x68] sm:$0xff] %v153
                %v155 = vld [vmem:[%s125 + $0xe0] sm:$0xff]
                %156 = vst [vmem:[%s126 + $0x70] sm:$0xff] %v155
                %v157 = vld [vmem:[%s125 + $0xf0] sm:$0xff]
                %158 = vst [vmem:[%s126 + $0x78] sm:$0xff] %v157
                %v159 = vld [vmem:[%s125 + $0x100] sm:$0xff]
                %160 = vst [vmem:[%s126 + $0x80] sm:$0xff] %v159
                %v161 = vld [vmem:[%s125 + $0x110] sm:$0xff]
                %162 = vst [vmem:[%s126 + $0x88] sm:$0xff] %v161
                %v163 = vld [vmem:[%s125 + $0x120] sm:$0xff]
                %164 = vst [vmem:[%s126 + $0x90] sm:$0xff] %v163
                %v165 = vld [vmem:[%s125 + $0x130] sm:$0xff]
                %166 = vst [vmem:[%s126 + $0x98] sm:$0xff] %v165
                %v167 = vld [vmem:[%s125 + $0x140] sm:$0xff]
                %168 = vst [vmem:[%s126 + $0xa0] sm:$0xff] %v167
                %v169 = vld [vmem:[%s125 + $0x150] sm:$0xff]
                %170 = vst [vmem:[%s126 + $0xa8] sm:$0xff] %v169
                %v171 = vld [vmem:[%s125 + $0x160] sm:$0xff]
                %172 = vst [vmem:[%s126 + $0xb0] sm:$0xff] %v171
                %v173 = vld [vmem:[%s125 + $0x170] sm:$0xff]
                %174 = vst [vmem:[%s126 + $0xb8] sm:$0xff] %v173
                %v175 = vld [vmem:[%s125 + $0x180] sm:$0xff]
                %176 = vst [vmem:[%s126 + $0xc0] sm:$0xff] %v175
                %v177 = vld [vmem:[%s125 + $0x190] sm:$0xff]
                %178 = vst [vmem:[%s126 + $0xc8] sm:$0xff] %v177
                %v179 = vld [vmem:[%s125 + $0x1a0] sm:$0xff]
                %180 = vst [vmem:[%s126 + $0xd0] sm:$0xff] %v179
                %v181 = vld [vmem:[%s125 + $0x1b0] sm:$0xff]
                %182 = vst [vmem:[%s126 + $0xd8] sm:$0xff] %v181
                %v183 = vld [vmem:[%s125 + $0x1c0] sm:$0xff]
                %184 = vst [vmem:[%s126 + $0xe0] sm:$0xff] %v183
                %v185 = vld [vmem:[%s125 + $0x1d0] sm:$0xff]
                %186 = vst [vmem:[%s126 + $0xe8] sm:$0xff] %v185
                %v187 = vld [vmem:[%s125 + $0x1e0] sm:$0xff]
                %188 = vst [vmem:[%s126 + $0xf0] sm:$0xff] %v187
                %v189 = vld [vmem:[%s125 + $0x1f0] sm:$0xff]
                %190 = vst [vmem:[%s126 + $0xf8] sm:$0xff] %v189
              $region41: #{tpu_custom_call.1} parent=35 // loop_footer
                %s124 = sadd.s32 1, %s120
              $region42: #{tpu_custom_call.1} parent=35 // loop_footer_branch
                %119 = sbr.rel target = $region38
              $region43: #{tpu_custom_call.1} parent=35 // loop_exit
                _
            $region36: #{tpu_custom_call.1} parent=27 // pred_fallthru
              _
          $region28: #{tpu_custom_call.1} parent=23 // pred_fallthru
            _
          %267 = vnop
        $region24: #{tpu_custom_call.1} parent=19 // pred_fallthru
          _
      $region20: #{tpu_custom_call.1} parent=5 // pred_fallthru
        _
      %p268 = scmp.le.s32.totalorder 1, %s8
      %p269 = scmp.lt.s32.totalorder %s8, 3
      %p270 = pnand %p268, %p269
      %p271 = pneg %p270
      // Predicated region
      $region59: #{tpu_custom_call.1} parent=5 // pred_check
        _
      $region60: #{tpu_custom_call.1} parent=5 // pred_check_branch
        %273 = sbr.rel (%p270) target = $region62
      $region61: #{tpu_custom_call.1} parent=5 // pred_region
        %s274 = ssub.s32 %s8, 1
        %s275 = sand.u32 %s21, 1
        %s276 = sand.u32 %s21, 1
        %s277 = smul.addr %s276, 256
        %s278 = scalar_lea.vmem [#allocation2], %s277
        // Predicated region
        $region63: #{tpu_custom_call.1} parent=61 // pred_check
          %p279 = pneg %p34
        $region64: #{tpu_custom_call.1} parent=61 // pred_check_branch
          %281 = sbr.rel (%p279) target = $region66
        $region65: #{tpu_custom_call.1} parent=61 // pred_region
          _
        $region66: #{tpu_custom_call.1} parent=61 // pred_fallthru
          _
        %s282 = sand.u32 %s21, 1
        %s283 = sand.u32 %s21, 1
        %s284 = smul.addr %s283, 256
        %s285 = scalar_lea.vmem [#allocation2], %s284
        %p286 = pneg %p34
        %p287 = pneg %p31
        %p288 = pneg %p55
        %p289 = pneg %p52
        %p290 = pneg %p81
        %p291 = pneg %p78
        %s292 = sand.u32 %s68, 1
        %s293 = sand.u32 %s68, 1
        %s294 = smul.addr %s293, 512
        %s295 = scalar_lea.vmem [#allocation3], %s294
        %v296 = vld [vmem:[%s278] sm:$0xff]
        %v297 = vld [vmem:[%s278 + $0x8] sm:$0xff]
        %v298 = vld [vmem:[%s278 + $0x10] sm:$0xff]
        %v299 = vld [vmem:[%s278 + $0x18] sm:$0xff]
        %v300 = vld [vmem:[%s278 + $0x20] sm:$0xff]
        %v301 = vld [vmem:[%s278 + $0x28] sm:$0xff]
        %v302 = vld [vmem:[%s278 + $0x30] sm:$0xff]
        %v303 = vld [vmem:[%s278 + $0x38] sm:$0xff]
        %v304 = vld [vmem:[%s278 + $0x40] sm:$0xff]
        %v305 = vld [vmem:[%s278 + $0x48] sm:$0xff]
        %v306 = vld [vmem:[%s278 + $0x50] sm:$0xff]
        %v307 = vld [vmem:[%s278 + $0x58] sm:$0xff]
        %v308 = vld [vmem:[%s278 + $0x60] sm:$0xff]
        %v309 = vld [vmem:[%s278 + $0x68] sm:$0xff]
        %v310 = vld [vmem:[%s278 + $0x70] sm:$0xff]
        %v311 = vld [vmem:[%s278 + $0x78] sm:$0xff]
        %v312 = vld [vmem:[%s278 + $0x80] sm:$0xff]
        %v313 = vld [vmem:[%s278 + $0x88] sm:$0xff]
        %v314 = vld [vmem:[%s278 + $0x90] sm:$0xff]
        %v315 = vld [vmem:[%s278 + $0x98] sm:$0xff]
        %v316 = vld [vmem:[%s278 + $0xa0] sm:$0xff]
        %v317 = vld [vmem:[%s278 + $0xa8] sm:$0xff]
        %v318 = vld [vmem:[%s278 + $0xb0] sm:$0xff]
        %v319 = vld [vmem:[%s278 + $0xb8] sm:$0xff]
        %v320 = vld [vmem:[%s278 + $0xc0] sm:$0xff]
        %v321 = vld [vmem:[%s278 + $0xc8] sm:$0xff]
        %v322 = vld [vmem:[%s278 + $0xd0] sm:$0xff]
        %v323 = vld [vmem:[%s278 + $0xd8] sm:$0xff]
        %v324 = vld [vmem:[%s278 + $0xe0] sm:$0xff]
        %v325 = vld [vmem:[%s278 + $0xe8] sm:$0xff]
        %v326 = vld [vmem:[%s278 + $0xf0] sm:$0xff]
        %v327 = vld [vmem:[%s278 + $0xf8] sm:$0xff]
        %329 = vset.pattern.permute.xlu0 0
        %330 = vperm.xlu0 %329, %v296
        %v331 = vpop.permute.xlu0 %330
        %334 = vset.pattern.permute.xlu0 0
        %335 = vperm.xlu0 %334, %v297
        %v336 = vpop.permute.xlu0 %335
        %339 = vset.pattern.permute.xlu0 0
        %340 = vperm.xlu0 %339, %v298
        %v341 = vpop.permute.xlu0 %340
        %344 = vset.pattern.permute.xlu0 0
        %345 = vperm.xlu0 %344, %v299
        %v346 = vpop.permute.xlu0 %345
        %349 = vset.pattern.permute.xlu0 0
        %350 = vperm.xlu0 %349, %v300
        %v351 = vpop.permute.xlu0 %350
        %354 = vset.pattern.permute.xlu0 0
        %355 = vperm.xlu0 %354, %v301
        %v356 = vpop.permute.xlu0 %355
        %359 = vset.pattern.permute.xlu0 0
        %360 = vperm.xlu0 %359, %v302
        %v361 = vpop.permute.xlu0 %360
        %364 = vset.pattern.permute.xlu0 0
        %365 = vperm.xlu0 %364, %v303
        %v366 = vpop.permute.xlu0 %365
        %369 = vset.pattern.permute.xlu0 0
        %370 = vperm.xlu0 %369, %v304
        %v371 = vpop.permute.xlu0 %370
        %374 = vset.pattern.permute.xlu0 0
        %375 = vperm.xlu0 %374, %v305
        %v376 = vpop.permute.xlu0 %375
        %379 = vset.pattern.permute.xlu0 0
        %380 = vperm.xlu0 %379, %v306
        %v381 = vpop.permute.xlu0 %380
        %384 = vset.pattern.permute.xlu0 0
        %385 = vperm.xlu0 %384, %v307
        %v386 = vpop.permute.xlu0 %385
        %389 = vset.pattern.permute.xlu0 0
        %390 = vperm.xlu0 %389, %v308
        %v391 = vpop.permute.xlu0 %390
        %394 = vset.pattern.permute.xlu0 0
        %395 = vperm.xlu0 %394, %v309
        %v396 = vpop.permute.xlu0 %395
        %399 = vset.pattern.permute.xlu0 0
        %400 = vperm.xlu0 %399, %v310
        %v401 = vpop.permute.xlu0 %400
        %404 = vset.pattern.permute.xlu0 0
        %405 = vperm.xlu0 %404, %v311
        %v406 = vpop.permute.xlu0 %405
        %409 = vset.pattern.permute.xlu0 0
        %410 = vperm.xlu0 %409, %v312
        %v411 = vpop.permute.xlu0 %410
        %414 = vset.pattern.permute.xlu0 0
        %415 = vperm.xlu0 %414, %v313
        %v416 = vpop.permute.xlu0 %415
        %419 = vset.pattern.permute.xlu0 0
        %420 = vperm.xlu0 %419, %v314
        %v421 = vpop.permute.xlu0 %420
        %424 = vset.pattern.permute.xlu0 0
        %425 = vperm.xlu0 %424, %v315
        %v426 = vpop.permute.xlu0 %425
        %429 = vset.pattern.permute.xlu0 0
        %430 = vperm.xlu0 %429, %v316
        %v431 = vpop.permute.xlu0 %430
        %434 = vset.pattern.permute.xlu0 0
        %435 = vperm.xlu0 %434, %v317
        %v436 = vpop.permute.xlu0 %435
        %439 = vset.pattern.permute.xlu0 0
        %440 = vperm.xlu0 %439, %v318
        %v441 = vpop.permute.xlu0 %440
        %444 = vset.pattern.permute.xlu0 0
        %445 = vperm.xlu0 %444, %v319
        %v446 = vpop.permute.xlu0 %445
        %449 = vset.pattern.permute.xlu0 0
        %450 = vperm.xlu0 %449, %v320
        %v451 = vpop.permute.xlu0 %450
        %454 = vset.pattern.permute.xlu0 0
        %455 = vperm.xlu0 %454, %v321
        %v456 = vpop.permute.xlu0 %455
        %459 = vset.pattern.permute.xlu0 0
        %460 = vperm.xlu0 %459, %v322
        %v461 = vpop.permute.xlu0 %460
        %464 = vset.pattern.permute.xlu0 0
        %465 = vperm.xlu0 %464, %v323
        %v466 = vpop.permute.xlu0 %465
        %469 = vset.pattern.permute.xlu0 0
        %470 = vperm.xlu0 %469, %v324
        %v471 = vpop.permute.xlu0 %470
        %474 = vset.pattern.permute.xlu0 0
        %475 = vperm.xlu0 %474, %v325
        %v476 = vpop.permute.xlu0 %475
        %479 = vset.pattern.permute.xlu0 0
        %480 = vperm.xlu0 %479, %v326
        %v481 = vpop.permute.xlu0 %480
        %484 = vset.pattern.permute.xlu0 0
        %485 = vperm.xlu0 %484, %v327
        %v486 = vpop.permute.xlu0 %485
        %vm488 = vcmask 130048
        %489 = vst.msk [vmem:[%s295] sm:$0xff] %vm488, %v331
        %490 = vst.msk [vmem:[%s295 + $0x8] sm:$0xff] %vm488, %v336
        %491 = vst.msk [vmem:[%s295 + $0x10] sm:$0xff] %vm488, %v341
        %492 = vst.msk [vmem:[%s295 + $0x18] sm:$0xff] %vm488, %v346
        %493 = vst.msk [vmem:[%s295 + $0x20] sm:$0xff] %vm488, %v351
        %494 = vst.msk [vmem:[%s295 + $0x28] sm:$0xff] %vm488, %v356
        %495 = vst.msk [vmem:[%s295 + $0x30] sm:$0xff] %vm488, %v361
        %496 = vst.msk [vmem:[%s295 + $0x38] sm:$0xff] %vm488, %v366
        %497 = vst.msk [vmem:[%s295 + $0x40] sm:$0xff] %vm488, %v371
        %498 = vst.msk [vmem:[%s295 + $0x48] sm:$0xff] %vm488, %v376
        %499 = vst.msk [vmem:[%s295 + $0x50] sm:$0xff] %vm488, %v381
        %500 = vst.msk [vmem:[%s295 + $0x58] sm:$0xff] %vm488, %v386
        %501 = vst.msk [vmem:[%s295 + $0x60] sm:$0xff] %vm488, %v391
        %502 = vst.msk [vmem:[%s295 + $0x68] sm:$0xff] %vm488, %v396
        %503 = vst.msk [vmem:[%s295 + $0x70] sm:$0xff] %vm488, %v401
        %504 = vst.msk [vmem:[%s295 + $0x78] sm:$0xff] %vm488, %v406
        %505 = vst.msk [vmem:[%s295 + $0x80] sm:$0xff] %vm488, %v411
        %506 = vst.msk [vmem:[%s295 + $0x88] sm:$0xff] %vm488, %v416
        %507 = vst.msk [vmem:[%s295 + $0x90] sm:$0xff] %vm488, %v421
        %508 = vst.msk [vmem:[%s295 + $0x98] sm:$0xff] %vm488, %v426
        %509 = vst.msk [vmem:[%s295 + $0xa0] sm:$0xff] %vm488, %v431
        %510 = vst.msk [vmem:[%s295 + $0xa8] sm:$0xff] %vm488, %v436
        %511 = vst.msk [vmem:[%s295 + $0xb0] sm:$0xff] %vm488, %v441
        %512 = vst.msk [vmem:[%s295 + $0xb8] sm:$0xff] %vm488, %v446
        %513 = vst.msk [vmem:[%s295 + $0xc0] sm:$0xff] %vm488, %v451
        %514 = vst.msk [vmem:[%s295 + $0xc8] sm:$0xff] %vm488, %v456
        %515 = vst.msk [vmem:[%s295 + $0xd0] sm:$0xff] %vm488, %v461
        %516 = vst.msk [vmem:[%s295 + $0xd8] sm:$0xff] %vm488, %v466
        %517 = vst.msk [vmem:[%s295 + $0xe0] sm:$0xff] %vm488, %v471
        %518 = vst.msk [vmem:[%s295 + $0xe8] sm:$0xff] %vm488, %v476
        %519 = vst.msk [vmem:[%s295 + $0xf0] sm:$0xff] %vm488, %v481
        %520 = vst.msk [vmem:[%s295 + $0xf8] sm:$0xff] %vm488, %v486
        %v521 = vld [vmem:[%s1] sm:$0x1]
        %v522 = vld [vmem:[%s1 + $0x1] sm:$0x1]
        %v523 = vld [vmem:[%s1 + $0x2] sm:$0x1]
        %v524 = vld [vmem:[%s1 + $0x3] sm:$0x1]
        %v525 = vld [vmem:[%s1 + $0x4] sm:$0x1]
        %v526 = vld [vmem:[%s1 + $0x5] sm:$0x1]
        %v527 = vld [vmem:[%s1 + $0x6] sm:$0x1]
        %v528 = vld [vmem:[%s1 + $0x7] sm:$0x1]
        %v529 = vld [vmem:[%s1 + $0x8] sm:$0x1]
        %v530 = vld [vmem:[%s1 + $0x9] sm:$0x1]
        %v531 = vld [vmem:[%s1 + $0xa] sm:$0x1]
        %v532 = vld [vmem:[%s1 + $0xb] sm:$0x1]
        %v533 = vld [vmem:[%s1 + $0xc] sm:$0x1]
        %v534 = vld [vmem:[%s1 + $0xd] sm:$0x1]
        %v535 = vld [vmem:[%s1 + $0xe] sm:$0x1]
        %v536 = vld [vmem:[%s1 + $0xf] sm:$0x1]
        %v537 = vld [vmem:[%s1 + $0x10] sm:$0x1]
        %v538 = vld [vmem:[%s1 + $0x11] sm:$0x1]
        %v539 = vld [vmem:[%s1 + $0x12] sm:$0x1]
        %v540 = vld [vmem:[%s1 + $0x13] sm:$0x1]
        %v541 = vld [vmem:[%s1 + $0x14] sm:$0x1]
        %v542 = vld [vmem:[%s1 + $0x15] sm:$0x1]
        %v543 = vld [vmem:[%s1 + $0x16] sm:$0x1]
        %v544 = vld [vmem:[%s1 + $0x17] sm:$0x1]
        %v545 = vld [vmem:[%s1 + $0x18] sm:$0x1]
        %v546 = vld [vmem:[%s1 + $0x19] sm:$0x1]
        %v547 = vld [vmem:[%s1 + $0x1a] sm:$0x1]
        %v548 = vld [vmem:[%s1 + $0x1b] sm:$0x1]
        %v549 = vld [vmem:[%s1 + $0x1c] sm:$0x1]
        %v550 = vld [vmem:[%s1 + $0x1d] sm:$0x1]
        %v551 = vld [vmem:[%s1 + $0x1e] sm:$0x1]
        %v552 = vld [vmem:[%s1 + $0x1f] sm:$0x1]
        %v585 = vlaneseq
        %v586 = vshrl.u32 %v585, 7
        %v587 = vsub.s32 0, %v586
        %v588 = vrot.slane %v521, %v587
        %v589 = vlaneseq
        %v590 = vshrl.u32 %v589, 7
        %v591 = vsub.s32 0, %v590
        %v592 = vrot.slane %v522, %v591
        %v593 = vlaneseq
        %v594 = vshrl.u32 %v593, 7
        %v595 = vsub.s32 0, %v594
        %v596 = vrot.slane %v523, %v595
        %v597 = vlaneseq
        %v598 = vshrl.u32 %v597, 7
        %v599 = vsub.s32 0, %v598
        %v600 = vrot.slane %v524, %v599
        %v601 = vlaneseq
        %v602 = vshrl.u32 %v601, 7
        %v603 = vsub.s32 0, %v602
        %v604 = vrot.slane %v525, %v603
        %v605 = vlaneseq
        %v606 = vshrl.u32 %v605, 7
        %v607 = vsub.s32 0, %v606
        %v608 = vrot.slane %v526, %v607
        %v609 = vlaneseq
        %v610 = vshrl.u32 %v609, 7
        %v611 = vsub.s32 0, %v610
        %v612 = vrot.slane %v527, %v611
        %v613 = vlaneseq
        %v614 = vshrl.u32 %v613, 7
        %v615 = vsub.s32 0, %v614
        %v616 = vrot.slane %v528, %v615
        %v617 = vlaneseq
        %v618 = vshrl.u32 %v617, 7
        %v619 = vsub.s32 0, %v618
        %v620 = vrot.slane %v529, %v619
        %v621 = vlaneseq
        %v622 = vshrl.u32 %v621, 7
        %v623 = vsub.s32 0, %v622
        %v624 = vrot.slane %v530, %v623
        %v625 = vlaneseq
        %v626 = vshrl.u32 %v625, 7
        %v627 = vsub.s32 0, %v626
        %v628 = vrot.slane %v531, %v627
        %v629 = vlaneseq
        %v630 = vshrl.u32 %v629, 7
        %v631 = vsub.s32 0, %v630
        %v632 = vrot.slane %v532, %v631
        %v633 = vlaneseq
        %v634 = vshrl.u32 %v633, 7
        %v635 = vsub.s32 0, %v634
        %v636 = vrot.slane %v533, %v635
        %v637 = vlaneseq
        %v638 = vshrl.u32 %v637, 7
        %v639 = vsub.s32 0, %v638
        %v640 = vrot.slane %v534, %v639
        %v641 = vlaneseq
        %v642 = vshrl.u32 %v641, 7
        %v643 = vsub.s32 0, %v642
        %v644 = vrot.slane %v535, %v643
        %v645 = vlaneseq
        %v646 = vshrl.u32 %v645, 7
        %v647 = vsub.s32 0, %v646
        %v648 = vrot.slane %v536, %v647
        %v649 = vlaneseq
        %v650 = vshrl.u32 %v649, 7
        %v651 = vsub.s32 0, %v650
        %v652 = vrot.slane %v537, %v651
        %v653 = vlaneseq
        %v654 = vshrl.u32 %v653, 7
        %v655 = vsub.s32 0, %v654
        %v656 = vrot.slane %v538, %v655
        %v657 = vlaneseq
        %v658 = vshrl.u32 %v657, 7
        %v659 = vsub.s32 0, %v658
        %v660 = vrot.slane %v539, %v659
        %v661 = vlaneseq
        %v662 = vshrl.u32 %v661, 7
        %v663 = vsub.s32 0, %v662
        %v664 = vrot.slane %v540, %v663
        %v665 = vlaneseq
        %v666 = vshrl.u32 %v665, 7
        %v667 = vsub.s32 0, %v666
        %v668 = vrot.slane %v541, %v667
        %v669 = vlaneseq
        %v670 = vshrl.u32 %v669, 7
        %v671 = vsub.s32 0, %v670
        %v672 = vrot.slane %v542, %v671
        %v673 = vlaneseq
        %v674 = vshrl.u32 %v673, 7
        %v675 = vsub.s32 0, %v674
        %v676 = vrot.slane %v543, %v675
        %v677 = vlaneseq
        %v678 = vshrl.u32 %v677, 7
        %v679 = vsub.s32 0, %v678
        %v680 = vrot.slane %v544, %v679
        %v681 = vlaneseq
        %v682 = vshrl.u32 %v681, 7
        %v683 = vsub.s32 0, %v682
        %v684 = vrot.slane %v545, %v683
        %v685 = vlaneseq
        %v686 = vshrl.u32 %v685, 7
        %v687 = vsub.s32 0, %v686
        %v688 = vrot.slane %v546, %v687
        %v689 = vlaneseq
        %v690 = vshrl.u32 %v689, 7
        %v691 = vsub.s32 0, %v690
        %v692 = vrot.slane %v547, %v691
        %v693 = vlaneseq
        %v694 = vshrl.u32 %v693, 7
        %v695 = vsub.s32 0, %v694
        %v696 = vrot.slane %v548, %v695
        %v697 = vlaneseq
        %v698 = vshrl.u32 %v697, 7
        %v699 = vsub.s32 0, %v698
        %v700 = vrot.slane %v549, %v699
        %v701 = vlaneseq
        %v702 = vshrl.u32 %v701, 7
        %v703 = vsub.s32 0, %v702
        %v704 = vrot.slane %v550, %v703
        %v705 = vlaneseq
        %v706 = vshrl.u32 %v705, 7
        %v707 = vsub.s32 0, %v706
        %v708 = vrot.slane %v551, %v707
        %v709 = vlaneseq
        %v710 = vshrl.u32 %v709, 7
        %v711 = vsub.s32 0, %v710
        %v712 = vrot.slane %v552, %v711
        %s745 = scalar_lea.vmem %s295, 256 [#allocation3]
        %746 = vst.msk [vmem:[%s745] sm:$0xff] %vm488, %v588
        %747 = vst.msk [vmem:[%s745 + $0x8] sm:$0xff] %vm488, %v592
        %748 = vst.msk [vmem:[%s745 + $0x10] sm:$0xff] %vm488, %v596
        %749 = vst.msk [vmem:[%s745 + $0x18] sm:$0xff] %vm488, %v600
        %750 = vst.msk [vmem:[%s745 + $0x20] sm:$0xff] %vm488, %v604
        %751 = vst.msk [vmem:[%s745 + $0x28] sm:$0xff] %vm488, %v608
        %752 = vst.msk [vmem:[%s745 + $0x30] sm:$0xff] %vm488, %v612
        %753 = vst.msk [vmem:[%s745 + $0x38] sm:$0xff] %vm488, %v616
        %754 = vst.msk [vmem:[%s745 + $0x40] sm:$0xff] %vm488, %v620
        %755 = vst.msk [vmem:[%s745 + $0x48] sm:$0xff] %vm488, %v624
        %756 = vst.msk [vmem:[%s745 + $0x50] sm:$0xff] %vm488, %v628
        %757 = vst.msk [vmem:[%s745 + $0x58] sm:$0xff] %vm488, %v632
        %758 = vst.msk [vmem:[%s745 + $0x60] sm:$0xff] %vm488, %v636
        %759 = vst.msk [vmem:[%s745 + $0x68] sm:$0xff] %vm488, %v640
        %760 = vst.msk [vmem:[%s745 + $0x70] sm:$0xff] %vm488, %v644
        %761 = vst.msk [vmem:[%s745 + $0x78] sm:$0xff] %vm488, %v648
        %762 = vst.msk [vmem:[%s745 + $0x80] sm:$0xff] %vm488, %v652
        %763 = vst.msk [vmem:[%s745 + $0x88] sm:$0xff] %vm488, %v656
        %764 = vst.msk [vmem:[%s745 + $0x90] sm:$0xff] %vm488, %v660
        %765 = vst.msk [vmem:[%s745 + $0x98] sm:$0xff] %vm488, %v664
        %766 = vst.msk [vmem:[%s745 + $0xa0] sm:$0xff] %vm488, %v668
        %767 = vst.msk [vmem:[%s745 + $0xa8] sm:$0xff] %vm488, %v672
        %768 = vst.msk [vmem:[%s745 + $0xb0] sm:$0xff] %vm488, %v676
        %769 = vst.msk [vmem:[%s745 + $0xb8] sm:$0xff] %vm488, %v680
        %770 = vst.msk [vmem:[%s745 + $0xc0] sm:$0xff] %vm488, %v684
        %771 = vst.msk [vmem:[%s745 + $0xc8] sm:$0xff] %vm488, %v688
        %772 = vst.msk [vmem:[%s745 + $0xd0] sm:$0xff] %vm488, %v692
        %773 = vst.msk [vmem:[%s745 + $0xd8] sm:$0xff] %vm488, %v696
        %774 = vst.msk [vmem:[%s745 + $0xe0] sm:$0xff] %vm488, %v700
        %775 = vst.msk [vmem:[%s745 + $0xe8] sm:$0xff] %vm488, %v704
        %776 = vst.msk [vmem:[%s745 + $0xf0] sm:$0xff] %vm488, %v708
        %777 = vst.msk [vmem:[%s745 + $0xf8] sm:$0xff] %vm488, %v712
        %s778 = sand.u32 %s68, 1
        %s779 = sand.u32 %s68, 1
        %s780 = smul.addr %s779, 512
        %s781 = scalar_lea.vmem [#allocation3], %s780
        // Predicated region
        $region67: #{tpu_custom_call.1} parent=61 // pred_check
          %p782 = pneg %p78
        $region68: #{tpu_custom_call.1} parent=61 // pred_check_branch
          %784 = sbr.rel (%p782) target = $region70
        $region69: #{tpu_custom_call.1} parent=61 // pred_region
          %s785 = smul.addr %s13, 8
          %s786 = scalar_lea.vmem %s2, %s785
          // Predicated region
          $region71: #{tpu_custom_call.1} parent=69 // pred_check
            _
          $region72: #{tpu_custom_call.1} parent=69 // pred_check_branch
            %788 = sbr.rel (0) target = $region74
          $region73: #{tpu_custom_call.1} parent=69 // pred_region
            // Predicated region
            $region75: #{tpu_custom_call.1} parent=73 // pred_check
              _
            $region76: #{tpu_custom_call.1} parent=73 // pred_check_branch
              %790 = sbr.rel (0) target = $region78
            $region77: #{tpu_custom_call.1} parent=73 // pred_region
              // Predicated region
              $region90: #{tpu_custom_call.1} parent=77 // pred_check
                _
              $region91: #{tpu_custom_call.1} parent=77 // pred_check_branch
                %931 = sbr.rel (0) target = $region93
              $region92: #{tpu_custom_call.1} parent=77 // pred_region
                loop: start=0, step=1, limit=1
                $region94: #{tpu_custom_call.1} parent=92 // loop_pre_header
                  _
                $region95: #{tpu_custom_call.1} parent=92 // loop_header
                  %s933 = sphi 0, %s937
                  %p934 = scmp.ge.s32.totalorder %s933, 1
                  %s938 = sphi %s781, %s781
                  %s939 = sphi %s786, %s786
                $region96: #{tpu_custom_call.1} parent=92 // loop_header_branch
                  %936 = sbr.rel (%p934) target = $region100
                $region97: #{tpu_custom_call.1} parent=92 // loop_body
                  %v940 = vld [vmem:[%s938] sm:$0xff]
                  %941 = vst [vmem:[%s939] sm:$0xff] %v940
                  %v942 = vld [vmem:[%s938 + $0x8] sm:$0xff]
                  %943 = vst [vmem:[%s939 + $0x10] sm:$0xff] %v942
                  %v944 = vld [vmem:[%s938 + $0x10] sm:$0xff]
                  %945 = vst [vmem:[%s939 + $0x20] sm:$0xff] %v944
                  %v946 = vld [vmem:[%s938 + $0x18] sm:$0xff]
                  %947 = vst [vmem:[%s939 + $0x30] sm:$0xff] %v946
                  %v948 = vld [vmem:[%s938 + $0x20] sm:$0xff]
                  %949 = vst [vmem:[%s939 + $0x40] sm:$0xff] %v948
                  %v950 = vld [vmem:[%s938 + $0x28] sm:$0xff]
                  %951 = vst [vmem:[%s939 + $0x50] sm:$0xff] %v950
                  %v952 = vld [vmem:[%s938 + $0x30] sm:$0xff]
                  %953 = vst [vmem:[%s939 + $0x60] sm:$0xff] %v952
                  %v954 = vld [vmem:[%s938 + $0x38] sm:$0xff]
                  %955 = vst [vmem:[%s939 + $0x70] sm:$0xff] %v954
                  %v956 = vld [vmem:[%s938 + $0x40] sm:$0xff]
                  %957 = vst [vmem:[%s939 + $0x80] sm:$0xff] %v956
                  %v958 = vld [vmem:[%s938 + $0x48] sm:$0xff]
                  %959 = vst [vmem:[%s939 + $0x90] sm:$0xff] %v958
                  %v960 = vld [vmem:[%s938 + $0x50] sm:$0xff]
                  %961 = vst [vmem:[%s939 + $0xa0] sm:$0xff] %v960
                  %v962 = vld [vmem:[%s938 + $0x58] sm:$0xff]
                  %963 = vst [vmem:[%s939 + $0xb0] sm:$0xff] %v962
                  %v964 = vld [vmem:[%s938 + $0x60] sm:$0xff]
                  %965 = vst [vmem:[%s939 + $0xc0] sm:$0xff] %v964
                  %v966 = vld [vmem:[%s938 + $0x68] sm:$0xff]
                  %967 = vst [vmem:[%s939 + $0xd0] sm:$0xff] %v966
                  %v968 = vld [vmem:[%s938 + $0x70] sm:$0xff]
                  %969 = vst [vmem:[%s939 + $0xe0] sm:$0xff] %v968
                  %v970 = vld [vmem:[%s938 + $0x78] sm:$0xff]
                  %971 = vst [vmem:[%s939 + $0xf0] sm:$0xff] %v970
                  %v972 = vld [vmem:[%s938 + $0x80] sm:$0xff]
                  %973 = vst [vmem:[%s939 + $0x100] sm:$0xff] %v972
                  %v974 = vld [vmem:[%s938 + $0x88] sm:$0xff]
                  %975 = vst [vmem:[%s939 + $0x110] sm:$0xff] %v974
                  %v976 = vld [vmem:[%s938 + $0x90] sm:$0xff]
                  %977 = vst [vmem:[%s939 + $0x120] sm:$0xff] %v976
                  %v978 = vld [vmem:[%s938 + $0x98] sm:$0xff]
                  %979 = vst [vmem:[%s939 + $0x130] sm:$0xff] %v978
                  %v980 = vld [vmem:[%s938 + $0xa0] sm:$0xff]
                  %981 = vst [vmem:[%s939 + $0x140] sm:$0xff] %v980
                  %v982 = vld [vmem:[%s938 + $0xa8] sm:$0xff]
                  %983 = vst [vmem:[%s939 + $0x150] sm:$0xff] %v982
                  %v984 = vld [vmem:[%s938 + $0xb0] sm:$0xff]
                  %985 = vst [vmem:[%s939 + $0x160] sm:$0xff] %v984
                  %v986 = vld [vmem:[%s938 + $0xb8] sm:$0xff]
                  %987 = vst [vmem:[%s939 + $0x170] sm:$0xff] %v986
                  %v988 = vld [vmem:[%s938 + $0xc0] sm:$0xff]
                  %989 = vst [vmem:[%s939 + $0x180] sm:$0xff] %v988
                  %v990 = vld [vmem:[%s938 + $0xc8] sm:$0xff]
                  %991 = vst [vmem:[%s939 + $0x190] sm:$0xff] %v990
                  %v992 = vld [vmem:[%s938 + $0xd0] sm:$0xff]
                  %993 = vst [vmem:[%s939 + $0x1a0] sm:$0xff] %v992
                  %v994 = vld [vmem:[%s938 + $0xd8] sm:$0xff]
                  %995 = vst [vmem:[%s939 + $0x1b0] sm:$0xff] %v994
                  %v996 = vld [vmem:[%s938 + $0xe0] sm:$0xff]
                  %997 = vst [vmem:[%s939 + $0x1c0] sm:$0xff] %v996
                  %v998 = vld [vmem:[%s938 + $0xe8] sm:$0xff]
                  %999 = vst [vmem:[%s939 + $0x1d0] sm:$0xff] %v998
                  %v1000 = vld [vmem:[%s938 + $0xf0] sm:$0xff]
                  %1001 = vst [vmem:[%s939 + $0x1e0] sm:$0xff] %v1000
                  %v1002 = vld [vmem:[%s938 + $0xf8] sm:$0xff]
                  %1003 = vst [vmem:[%s939 + $0x1f0] sm:$0xff] %v1002
                  %v1004 = vld [vmem:[%s938 + $0x100] sm:$0xff]
                  %1005 = vst [vmem:[%s939 + $0x200] sm:$0xff] %v1004
                  %v1006 = vld [vmem:[%s938 + $0x108] sm:$0xff]
                  %1007 = vst [vmem:[%s939 + $0x210] sm:$0xff] %v1006
                  %v1008 = vld [vmem:[%s938 + $0x110] sm:$0xff]
                  %1009 = vst [vmem:[%s939 + $0x220] sm:$0xff] %v1008
                  %v1010 = vld [vmem:[%s938 + $0x118] sm:$0xff]
                  %1011 = vst [vmem:[%s939 + $0x230] sm:$0xff] %v1010
                  %v1012 = vld [vmem:[%s938 + $0x120] sm:$0xff]
                  %1013 = vst [vmem:[%s939 + $0x240] sm:$0xff] %v1012
                  %v1014 = vld [vmem:[%s938 + $0x128] sm:$0xff]
                  %1015 = vst [vmem:[%s939 + $0x250] sm:$0xff] %v1014
                  %v1016 = vld [vmem:[%s938 + $0x130] sm:$0xff]
                  %1017 = vst [vmem:[%s939 + $0x260] sm:$0xff] %v1016
                  %v1018 = vld [vmem:[%s938 + $0x138] sm:$0xff]
                  %1019 = vst [vmem:[%s939 + $0x270] sm:$0xff] %v1018
                  %v1020 = vld [vmem:[%s938 + $0x140] sm:$0xff]
                  %1021 = vst [vmem:[%s939 + $0x280] sm:$0xff] %v1020
                  %v1022 = vld [vmem:[%s938 + $0x148] sm:$0xff]
                  %1023 = vst [vmem:[%s939 + $0x290] sm:$0xff] %v1022
                  %v1024 = vld [vmem:[%s938 + $0x150] sm:$0xff]
                  %1025 = vst [vmem:[%s939 + $0x2a0] sm:$0xff] %v1024
                  %v1026 = vld [vmem:[%s938 + $0x158] sm:$0xff]
                  %1027 = vst [vmem:[%s939 + $0x2b0] sm:$0xff] %v1026
                  %v1028 = vld [vmem:[%s938 + $0x160] sm:$0xff]
                  %1029 = vst [vmem:[%s939 + $0x2c0] sm:$0xff] %v1028
                  %v1030 = vld [vmem:[%s938 + $0x168] sm:$0xff]
                  %1031 = vst [vmem:[%s939 + $0x2d0] sm:$0xff] %v1030
                  %v1032 = vld [vmem:[%s938 + $0x170] sm:$0xff]
                  %1033 = vst [vmem:[%s939 + $0x2e0] sm:$0xff] %v1032
                  %v1034 = vld [vmem:[%s938 + $0x178] sm:$0xff]
                  %1035 = vst [vmem:[%s939 + $0x2f0] sm:$0xff] %v1034
                  %v1036 = vld [vmem:[%s938 + $0x180] sm:$0xff]
                  %1037 = vst [vmem:[%s939 + $0x300] sm:$0xff] %v1036
                  %v1038 = vld [vmem:[%s938 + $0x188] sm:$0xff]
                  %1039 = vst [vmem:[%s939 + $0x310] sm:$0xff] %v1038
                  %v1040 = vld [vmem:[%s938 + $0x190] sm:$0xff]
                  %1041 = vst [vmem:[%s939 + $0x320] sm:$0xff] %v1040
                  %v1042 = vld [vmem:[%s938 + $0x198] sm:$0xff]
                  %1043 = vst [vmem:[%s939 + $0x330] sm:$0xff] %v1042
                  %v1044 = vld [vmem:[%s938 + $0x1a0] sm:$0xff]
                  %1045 = vst [vmem:[%s939 + $0x340] sm:$0xff] %v1044
                  %v1046 = vld [vmem:[%s938 + $0x1a8] sm:$0xff]
                  %1047 = vst [vmem:[%s939 + $0x350] sm:$0xff] %v1046
                  %v1048 = vld [vmem:[%s938 + $0x1b0] sm:$0xff]
                  %1049 = vst [vmem:[%s939 + $0x360] sm:$0xff] %v1048
                  %v1050 = vld [vmem:[%s938 + $0x1b8] sm:$0xff]
                  %1051 = vst [vmem:[%s939 + $0x370] sm:$0xff] %v1050
                  %v1052 = vld [vmem:[%s938 + $0x1c0] sm:$0xff]
                  %1053 = vst [vmem:[%s939 + $0x380] sm:$0xff] %v1052
                  %v1054 = vld [vmem:[%s938 + $0x1c8] sm:$0xff]
                  %1055 = vst [vmem:[%s939 + $0x390] sm:$0xff] %v1054
                  %v1056 = vld [vmem:[%s938 + $0x1d0] sm:$0xff]
                  %1057 = vst [vmem:[%s939 + $0x3a0] sm:$0xff] %v1056
                  %v1058 = vld [vmem:[%s938 + $0x1d8] sm:$0xff]
                  %1059 = vst [vmem:[%s939 + $0x3b0] sm:$0xff] %v1058
                  %v1060 = vld [vmem:[%s938 + $0x1e0] sm:$0xff]
                  %1061 = vst [vmem:[%s939 + $0x3c0] sm:$0xff] %v1060
                  %v1062 = vld [vmem:[%s938 + $0x1e8] sm:$0xff]
                  %1063 = vst [vmem:[%s939 + $0x3d0] sm:$0xff] %v1062
                  %v1064 = vld [vmem:[%s938 + $0x1f0] sm:$0xff]
                  %1065 = vst [vmem:[%s939 + $0x3e0] sm:$0xff] %v1064
                  %v1066 = vld [vmem:[%s938 + $0x1f8] sm:$0xff]
                  %1067 = vst [vmem:[%s939 + $0x3f0] sm:$0xff] %v1066
                $region98: #{tpu_custom_call.1} parent=92 // loop_footer
                  %s937 = sadd.s32 1, %s933
                $region99: #{tpu_custom_call.1} parent=92 // loop_footer_branch
                  %932 = sbr.rel target = $region95
                $region100: #{tpu_custom_call.1} parent=92 // loop_exit
                  _
              $region93: #{tpu_custom_call.1} parent=77 // pred_fallthru
                _
              // Predicated region
              $region101: #{tpu_custom_call.1} parent=77 // pred_check
                _
              $region102: #{tpu_custom_call.1} parent=77 // pred_check_branch
                %1069 = sbr.rel target = $region104
              $region103: #{tpu_custom_call.1} parent=77 // pred_region
                _
              $region104: #{tpu_custom_call.1} parent=77 // pred_fallthru
                _
            $region78: #{tpu_custom_call.1} parent=73 // pred_fallthru
              _
            // Predicated region
            $region79: #{tpu_custom_call.1} parent=73 // pred_check
              _
            $region80: #{tpu_custom_call.1} parent=73 // pred_check_branch
              %792 = sbr.rel target = $region82
            $region81: #{tpu_custom_call.1} parent=73 // pred_region
              loop: start=0, step=1, limit=1
              $region83: #{tpu_custom_call.1} parent=81 // loop_pre_header
                _
              $region84: #{tpu_custom_call.1} parent=81 // loop_header
                %s795 = sphi 0, %s799
                %p796 = scmp.ge.s32.totalorder %s795, 1
                %s800 = sphi %s781, %s781
                %s801 = sphi %s786, %s786
              $region85: #{tpu_custom_call.1} parent=81 // loop_header_branch
                %798 = sbr.rel (%p796) target = $region89
              $region86: #{tpu_custom_call.1} parent=81 // loop_body
                %v802 = vld [vmem:[%s800] sm:$0xff]
                %803 = vst [vmem:[%s801] sm:$0xff] %v802
                %v804 = vld [vmem:[%s800 + $0x8] sm:$0xff]
                %805 = vst [vmem:[%s801 + $0x10] sm:$0xff] %v804
                %v806 = vld [vmem:[%s800 + $0x10] sm:$0xff]
                %807 = vst [vmem:[%s801 + $0x20] sm:$0xff] %v806
                %v808 = vld [vmem:[%s800 + $0x18] sm:$0xff]
                %809 = vst [vmem:[%s801 + $0x30] sm:$0xff] %v808
                %v810 = vld [vmem:[%s800 + $0x20] sm:$0xff]
                %811 = vst [vmem:[%s801 + $0x40] sm:$0xff] %v810
                %v812 = vld [vmem:[%s800 + $0x28] sm:$0xff]
                %813 = vst [vmem:[%s801 + $0x50] sm:$0xff] %v812
                %v814 = vld [vmem:[%s800 + $0x30] sm:$0xff]
                %815 = vst [vmem:[%s801 + $0x60] sm:$0xff] %v814
                %v816 = vld [vmem:[%s800 + $0x38] sm:$0xff]
                %817 = vst [vmem:[%s801 + $0x70] sm:$0xff] %v816
                %v818 = vld [vmem:[%s800 + $0x40] sm:$0xff]
                %819 = vst [vmem:[%s801 + $0x80] sm:$0xff] %v818
                %v820 = vld [vmem:[%s800 + $0x48] sm:$0xff]
                %821 = vst [vmem:[%s801 + $0x90] sm:$0xff] %v820
                %v822 = vld [vmem:[%s800 + $0x50] sm:$0xff]
                %823 = vst [vmem:[%s801 + $0xa0] sm:$0xff] %v822
                %v824 = vld [vmem:[%s800 + $0x58] sm:$0xff]
                %825 = vst [vmem:[%s801 + $0xb0] sm:$0xff] %v824
                %v826 = vld [vmem:[%s800 + $0x60] sm:$0xff]
                %827 = vst [vmem:[%s801 + $0xc0] sm:$0xff] %v826
                %v828 = vld [vmem:[%s800 + $0x68] sm:$0xff]
                %829 = vst [vmem:[%s801 + $0xd0] sm:$0xff] %v828
                %v830 = vld [vmem:[%s800 + $0x70] sm:$0xff]
                %831 = vst [vmem:[%s801 + $0xe0] sm:$0xff] %v830
                %v832 = vld [vmem:[%s800 + $0x78] sm:$0xff]
                %833 = vst [vmem:[%s801 + $0xf0] sm:$0xff] %v832
                %v834 = vld [vmem:[%s800 + $0x80] sm:$0xff]
                %835 = vst [vmem:[%s801 + $0x100] sm:$0xff] %v834
                %v836 = vld [vmem:[%s800 + $0x88] sm:$0xff]
                %837 = vst [vmem:[%s801 + $0x110] sm:$0xff] %v836
                %v838 = vld [vmem:[%s800 + $0x90] sm:$0xff]
                %839 = vst [vmem:[%s801 + $0x120] sm:$0xff] %v838
                %v840 = vld [vmem:[%s800 + $0x98] sm:$0xff]
                %841 = vst [vmem:[%s801 + $0x130] sm:$0xff] %v840
                %v842 = vld [vmem:[%s800 + $0xa0] sm:$0xff]
                %843 = vst [vmem:[%s801 + $0x140] sm:$0xff] %v842
                %v844 = vld [vmem:[%s800 + $0xa8] sm:$0xff]
                %845 = vst [vmem:[%s801 + $0x150] sm:$0xff] %v844
                %v846 = vld [vmem:[%s800 + $0xb0] sm:$0xff]
                %847 = vst [vmem:[%s801 + $0x160] sm:$0xff] %v846
                %v848 = vld [vmem:[%s800 + $0xb8] sm:$0xff]
                %849 = vst [vmem:[%s801 + $0x170] sm:$0xff] %v848
                %v850 = vld [vmem:[%s800 + $0xc0] sm:$0xff]
                %851 = vst [vmem:[%s801 + $0x180] sm:$0xff] %v850
                %v852 = vld [vmem:[%s800 + $0xc8] sm:$0xff]
                %853 = vst [vmem:[%s801 + $0x190] sm:$0xff] %v852
                %v854 = vld [vmem:[%s800 + $0xd0] sm:$0xff]
                %855 = vst [vmem:[%s801 + $0x1a0] sm:$0xff] %v854
                %v856 = vld [vmem:[%s800 + $0xd8] sm:$0xff]
                %857 = vst [vmem:[%s801 + $0x1b0] sm:$0xff] %v856
                %v858 = vld [vmem:[%s800 + $0xe0] sm:$0xff]
                %859 = vst [vmem:[%s801 + $0x1c0] sm:$0xff] %v858
                %v860 = vld [vmem:[%s800 + $0xe8] sm:$0xff]
                %861 = vst [vmem:[%s801 + $0x1d0] sm:$0xff] %v860
                %v862 = vld [vmem:[%s800 + $0xf0] sm:$0xff]
                %863 = vst [vmem:[%s801 + $0x1e0] sm:$0xff] %v862
                %v864 = vld [vmem:[%s800 + $0xf8] sm:$0xff]
                %865 = vst [vmem:[%s801 + $0x1f0] sm:$0xff] %v864
                %v866 = vld [vmem:[%s800 + $0x100] sm:$0xff]
                %867 = vst [vmem:[%s801 + $0x200] sm:$0xff] %v866
                %v868 = vld [vmem:[%s800 + $0x108] sm:$0xff]
                %869 = vst [vmem:[%s801 + $0x210] sm:$0xff] %v868
                %v870 = vld [vmem:[%s800 + $0x110] sm:$0xff]
                %871 = vst [vmem:[%s801 + $0x220] sm:$0xff] %v870
                %v872 = vld [vmem:[%s800 + $0x118] sm:$0xff]
                %873 = vst [vmem:[%s801 + $0x230] sm:$0xff] %v872
                %v874 = vld [vmem:[%s800 + $0x120] sm:$0xff]
                %875 = vst [vmem:[%s801 + $0x240] sm:$0xff] %v874
                %v876 = vld [vmem:[%s800 + $0x128] sm:$0xff]
                %877 = vst [vmem:[%s801 + $0x250] sm:$0xff] %v876
                %v878 = vld [vmem:[%s800 + $0x130] sm:$0xff]
                %879 = vst [vmem:[%s801 + $0x260] sm:$0xff] %v878
                %v880 = vld [vmem:[%s800 + $0x138] sm:$0xff]
                %881 = vst [vmem:[%s801 + $0x270] sm:$0xff] %v880
                %v882 = vld [vmem:[%s800 + $0x140] sm:$0xff]
                %883 = vst [vmem:[%s801 + $0x280] sm:$0xff] %v882
                %v884 = vld [vmem:[%s800 + $0x148] sm:$0xff]
                %885 = vst [vmem:[%s801 + $0x290] sm:$0xff] %v884
                %v886 = vld [vmem:[%s800 + $0x150] sm:$0xff]
                %887 = vst [vmem:[%s801 + $0x2a0] sm:$0xff] %v886
                %v888 = vld [vmem:[%s800 + $0x158] sm:$0xff]
                %889 = vst [vmem:[%s801 + $0x2b0] sm:$0xff] %v888
                %v890 = vld [vmem:[%s800 + $0x160] sm:$0xff]
                %891 = vst [vmem:[%s801 + $0x2c0] sm:$0xff] %v890
                %v892 = vld [vmem:[%s800 + $0x168] sm:$0xff]
                %893 = vst [vmem:[%s801 + $0x2d0] sm:$0xff] %v892
                %v894 = vld [vmem:[%s800 + $0x170] sm:$0xff]
                %895 = vst [vmem:[%s801 + $0x2e0] sm:$0xff] %v894
                %v896 = vld [vmem:[%s800 + $0x178] sm:$0xff]
                %897 = vst [vmem:[%s801 + $0x2f0] sm:$0xff] %v896
                %v898 = vld [vmem:[%s800 + $0x180] sm:$0xff]
                %899 = vst [vmem:[%s801 + $0x300] sm:$0xff] %v898
                %v900 = vld [vmem:[%s800 + $0x188] sm:$0xff]
                %901 = vst [vmem:[%s801 + $0x310] sm:$0xff] %v900
                %v902 = vld [vmem:[%s800 + $0x190] sm:$0xff]
                %903 = vst [vmem:[%s801 + $0x320] sm:$0xff] %v902
                %v904 = vld [vmem:[%s800 + $0x198] sm:$0xff]
                %905 = vst [vmem:[%s801 + $0x330] sm:$0xff] %v904
                %v906 = vld [vmem:[%s800 + $0x1a0] sm:$0xff]
                %907 = vst [vmem:[%s801 + $0x340] sm:$0xff] %v906
                %v908 = vld [vmem:[%s800 + $0x1a8] sm:$0xff]
                %909 = vst [vmem:[%s801 + $0x350] sm:$0xff] %v908
                %v910 = vld [vmem:[%s800 + $0x1b0] sm:$0xff]
                %911 = vst [vmem:[%s801 + $0x360] sm:$0xff] %v910
                %v912 = vld [vmem:[%s800 + $0x1b8] sm:$0xff]
                %913 = vst [vmem:[%s801 + $0x370] sm:$0xff] %v912
                %v914 = vld [vmem:[%s800 + $0x1c0] sm:$0xff]
                %915 = vst [vmem:[%s801 + $0x380] sm:$0xff] %v914
                %v916 = vld [vmem:[%s800 + $0x1c8] sm:$0xff]
                %917 = vst [vmem:[%s801 + $0x390] sm:$0xff] %v916
                %v918 = vld [vmem:[%s800 + $0x1d0] sm:$0xff]
                %919 = vst [vmem:[%s801 + $0x3a0] sm:$0xff] %v918
                %v920 = vld [vmem:[%s800 + $0x1d8] sm:$0xff]
                %921 = vst [vmem:[%s801 + $0x3b0] sm:$0xff] %v920
                %v922 = vld [vmem:[%s800 + $0x1e0] sm:$0xff]
                %923 = vst [vmem:[%s801 + $0x3c0] sm:$0xff] %v922
                %v924 = vld [vmem:[%s800 + $0x1e8] sm:$0xff]
                %925 = vst [vmem:[%s801 + $0x3d0] sm:$0xff] %v924
                %v926 = vld [vmem:[%s800 + $0x1f0] sm:$0xff]
                %927 = vst [vmem:[%s801 + $0x3e0] sm:$0xff] %v926
                %v928 = vld [vmem:[%s800 + $0x1f8] sm:$0xff]
                %929 = vst [vmem:[%s801 + $0x3f0] sm:$0xff] %v928
              $region87: #{tpu_custom_call.1} parent=81 // loop_footer
                %s799 = sadd.s32 1, %s795
              $region88: #{tpu_custom_call.1} parent=81 // loop_footer_branch
                %794 = sbr.rel target = $region84
              $region89: #{tpu_custom_call.1} parent=81 // loop_exit
                _
            $region82: #{tpu_custom_call.1} parent=73 // pred_fallthru
              _
          $region74: #{tpu_custom_call.1} parent=69 // pred_fallthru
            _
          %1070 = vnop
        $region70: #{tpu_custom_call.1} parent=61 // pred_fallthru
          _
      $region62: #{tpu_custom_call.1} parent=5 // pred_fallthru
        _
      %p1071 = scmp.le.s32.totalorder 2, %s8
      // Predicated region
      $region105: #{tpu_custom_call.1} parent=5 // pred_check
        %p1072 = pneg %p1071
      $region106: #{tpu_custom_call.1} parent=5 // pred_check_branch
        %1074 = sbr.rel (%p1072) target = $region108
      $region107: #{tpu_custom_call.1} parent=5 // pred_region
        %s1075 = ssub.s32 %s8, 2
        // Predicated region
        $region109: #{tpu_custom_call.1} parent=107 // pred_check
          %p1076 = pneg %p84
        $region110: #{tpu_custom_call.1} parent=107 // pred_check_branch
          %1078 = sbr.rel (%p1076) target = $region112
        $region111: #{tpu_custom_call.1} parent=107 // pred_region
          %s1079 = sand.u32 %s69, 1
          %s1080 = sand.u32 %s69, 1
          %s1081 = smul.addr %s1080, 512
          %s1082 = scalar_lea.vmem [#allocation3], %s1081
        $region112: #{tpu_custom_call.1} parent=107 // pred_fallthru
          _
      $region108: #{tpu_custom_call.1} parent=5 // pred_fallthru
        _
    $region6: #{tpu_custom_call.1} parent=1 // loop_footer
      %s12 = sadd.s32 1, %s8
    $region7: #{tpu_custom_call.1} parent=1 // loop_footer_branch
      %7 = sbr.rel target = $region3
    $region8: #{tpu_custom_call.1} parent=1 // loop_exit
      _

</llo_original>
